<compile_context>
chip_gen: v7x
topology: tpu7x:2x2x1
jax: 0.10.0
libtpu: 0.0.40
codegen_flags: <defaults>
</compile_context>

<pallas_src>
import functools

import jax
import jax.numpy as jnp
from jax.experimental import pallas as pl
from jax.experimental.pallas import tpu as pltpu


def _round_up(v, m):
    return ((v + m - 1) // m) * m


def _vmem_capacity_bytes():
    try:
        return int(pltpu.get_tpu_info().vmem_capacity_bytes)
    except Exception:
        return 64 * 1024 * 1024  # conservative (v7x per-TC VMEM)


def focal_loss_kernel(x_ref, t_ref, o_ref, *, gamma, n_valid, c_valid,
                      mask_rows, mask_cols, fold_cols, binary_targets):
    rt, ct = x_ref.shape
    # Inputs may be bf16 etc.; upcast in-register (keeps HBM traffic low).
    x = x_ref[...].astype(jnp.float32)
    t = t_ref[...].astype(jnp.float32)

    # Stable BCE-with-logits, identical to the PyTorch max_val formulation:
    #   x - x*t + max(-x,0) + log(exp(-max_val) + exp(-x - max_val))
    #   == max(x,0) - x*t + log1p(exp(-|x|))
    e = jnp.exp(-jnp.abs(x))
    bce = jnp.maximum(x, 0.0) - x * t + jnp.log1p(e)

    # Focal weight = sigmoid(z)^gamma with z = -x*(2t-1) = x*(1-2t).
    z = x * (1.0 - 2.0 * t)
    # For hard targets (t in {0,1}), |z| == |x|, so exp(-|z|) reuses e.
    ez = e if binary_targets else jnp.exp(-jnp.abs(z))
    if gamma == 2:
        # sigmoid(z) = where(z>=0, 1, ez) / (1 + ez); square it (no extra exp/log).
        s = jnp.where(z >= 0.0, 1.0, ez) * pl.reciprocal(1.0 + ez, approx=False)
        weight = s * s
    else:
        weight = jnp.exp(gamma * (jnp.minimum(z, 0.0) - jnp.log1p(ez)))

    focal = weight * bce

    def fold_and_store(vals):
        # Lane-dense partial sums via whole-vreg VPU adds (no XLU reduce).
        part = jnp.sum(vals.reshape(rt // 8, 8, ct), axis=0)
        if fold_cols:
            part = jnp.sum(part.reshape(8, ct // 128, 128), axis=1)
        o_ref[...] = part

    if mask_rows or mask_cols:
        i = pl.program_id(0)
        j = pl.program_id(1)
        conds = []
        if mask_rows:
            conds.append(i == pl.num_programs(0) - 1)
        if mask_cols:
            conds.append(j == pl.num_programs(1) - 1)
        is_boundary = conds[0]
        for c in conds[1:]:
            is_boundary = jnp.logical_or(is_boundary, c)

        @pl.when(is_boundary)
        def _():
            # Mask from narrow iotas only on boundary blocks; zeroes padded
            # rows/cols so garbage from partial-block DMAs never reaches sums.
            valid = None
            if mask_rows:
                rows = jax.lax.broadcasted_iota(jnp.int32, (rt, 1), 0) + i * rt
                valid = rows < n_valid
            if mask_cols:
                cols = jax.lax.broadcasted_iota(jnp.int32, (1, ct), 1) + j * ct
                cvalid = cols < c_valid
                valid = cvalid if valid is None else jnp.logical_and(valid, cvalid)
            fold_and_store(jnp.where(valid, focal, 0.0))

        @pl.when(jnp.logical_not(is_boundary))
        def _():
            fold_and_store(focal)
    else:
        fold_and_store(focal)


def focal_loss(x, t, *, gamma=2.0, assume_binary_targets=False):
    if x.shape != t.shape:
        raise ValueError(
            "Target size ({}) must be the same as input size ({})".format(
                t.shape, x.shape))
    N, C = x.shape
    itemsize = jnp.dtype(x.dtype).itemsize

    # --- Tile selection (no wrapper-side padding; ragged edges masked in-kernel).
    vmem_phys = _vmem_capacity_bytes()
    # Per-input block budget: 2 inputs x 2 pipeline buffers must leave headroom.
    block_bytes = max(1 << 20, min(8 << 20, vmem_phys // 12))

    if C <= 8192:
        col_tile = C              # full-dim block: exempt from 128-divisibility
    else:
        col_tile = 2048           # multiple of 128
    row_tile = max(8, min(_round_up(N, 8),
                          (block_bytes // (col_tile * itemsize)) // 8 * 8))

    n_i = pl.cdiv(N, row_tile)
    n_j = pl.cdiv(C, col_tile)

    # v7x shards parallel grid axes over 2 TensorCores: make sure a
    # single-block problem still yields >= 2 grid steps.
    if n_i * n_j == 1 and N > 8:
        row_tile = max(8, _round_up(pl.cdiv(N, 2), 8))
        n_i = pl.cdiv(N, row_tile)

    mask_rows = (N % row_tile) != 0
    mask_cols = (C % col_tile) != 0
    fold_cols = (col_tile % 128) == 0
    out_cols = 128 if fold_cols else col_tile

    kernel = functools.partial(
        focal_loss_kernel, gamma=gamma, n_valid=N, c_valid=C,
        mask_rows=mask_rows, mask_cols=mask_cols, fold_cols=fold_cols,
        binary_targets=assume_binary_targets)

    block_in_bytes = row_tile * col_tile * itemsize
    vmem_limit = int(min(0.8 * vmem_phys,
                         max(32 << 20, 4 * block_in_bytes + (8 << 20))))

    partials = pl.pallas_call(
        kernel,
        out_shape=jax.ShapeDtypeStruct((n_i * 8, n_j * out_cols), jnp.float32),
        grid_spec=pltpu.PrefetchScalarGridSpec(
            num_scalar_prefetch=0,
            grid=(n_i, n_j),
            in_specs=[
                pl.BlockSpec((row_tile, col_tile), lambda i, j: (i, j)),
                pl.BlockSpec((row_tile, col_tile), lambda i, j: (i, j)),
            ],
            out_specs=pl.BlockSpec((8, out_cols), lambda i, j: (i, j)),
        ),
        compiler_params=pltpu.CompilerParams(
            dimension_semantics=("parallel", "parallel"),
            vmem_limit_bytes=vmem_limit,
        ),
    )(x, t)

    # loss.sum(dim=1).mean() over the original N rows.
    return jnp.sum(partials) / N


def focal_loss_ref(x, t, gamma=2.0):
    """Pure-JAX reference mirroring the PyTorch forward, for validation."""
    x = x.astype(jnp.float32)
    t = t.astype(jnp.float32)
    max_val = jnp.maximum(-x, 0.0)
    loss = x - x * t + max_val + jnp.log(jnp.exp(-max_val) + jnp.exp(-x - max_val))
    invprobs = jax.nn.log_sigmoid(-x * (t * 2.0 - 1.0))
    loss = jnp.exp(invprobs * gamma) * loss
    return jnp.mean(jnp.sum(loss, axis=1))


if __name__ == "__main__":
    key = jax.random.PRNGKey(0)
    k1, k2, k3, k4 = jax.random.split(key, 4)

    # Case 1: deliberately ragged (N not /8, C not /128) with hard {0,1} targets;
    # exercises unpadded boundary blocks, the pl.when mask path and exp-sharing.
    N, C = 10, 200
    x1 = jax.random.normal(k1, (N, C), dtype=jnp.float32) * 2.0
    t1 = jax.random.bernoulli(k2, p=0.3, shape=(N, C)).astype(jnp.float32)
    out1 = jax.block_until_ready(focal_loss(x1, t1, assume_binary_targets=True))
    ref1 = focal_loss_ref(x1, t1)
    assert jnp.allclose(out1, ref1, rtol=1e-4, atol=1e-5), (out1, ref1)

    # Case 2: aligned shapes with soft targets (default path, column folding).
    x2 = jax.random.normal(k3, (16, 256), dtype=jnp.float32) * 2.0
    t2 = jax.random.uniform(k4, (16, 256), dtype=jnp.float32)
    out2 = jax.block_until_ready(focal_loss(x2, t2))
    ref2 = focal_loss_ref(x2, t2)
    assert jnp.allclose(out2, ref2, rtol=1e-4, atol=1e-5), (out2, ref2)

    print("KERNEL_OK")
</pallas_src>

<mosaic_0001>
module attributes {stable_mosaic.version = 11 : i64} {
  func.func @focal_loss_kernel(%arg0: i32, %arg1: i32, %arg2: memref<8x200xf32, #tpu.memory_space<vmem>>, %arg3: memref<8x200xf32, #tpu.memory_space<vmem>>, %arg4: memref<8x200xf32, #tpu.memory_space<vmem>>) attributes {dimension_semantics = [#tpu.dimension_semantics<parallel>, #tpu.dimension_semantics<parallel>], iteration_bounds = array<i64: 2, 1>, scalar_prefetch = 0 : i64, scratch_operands = 0 : i64, tpu.core_type = #tpu.core_type<tc>, window_params = [{transform_indices = @transform_0, window_bounds = array<i64: 8, 200>}, {transform_indices = @transform_1, window_bounds = array<i64: 8, 200>}, {transform_indices = @transform_2, window_bounds = array<i64: 8, 200>}]} {
    %c0 = arith.constant 0 : index
    %c0_0 = arith.constant 0 : index
    %0 = vector.load %arg2[%c0, %c0_0] : memref<8x200xf32, #tpu.memory_space<vmem>>, vector<8x200xf32>
    %c0_1 = arith.constant 0 : index
    %c0_2 = arith.constant 0 : index
    %1 = vector.load %arg3[%c0_1, %c0_2] : memref<8x200xf32, #tpu.memory_space<vmem>>, vector<8x200xf32>
    %2 = math.absf %0 : vector<8x200xf32>
    %cst = arith.constant 0.000000e+00 : f32
    %3 = vector.broadcast %cst : f32 to vector<8x200xf32>
    %4 = arith.subf %3, %2 : vector<8x200xf32>
    %5 = math.exp %4 : vector<8x200xf32>
    %cst_3 = arith.constant 0.000000e+00 : f32
    %6 = vector.broadcast %cst_3 : f32 to vector<8x200xf32>
    %7 = arith.maximumf %0, %6 : vector<8x200xf32>
    %8 = arith.mulf %0, %1 : vector<8x200xf32>
    %9 = arith.subf %7, %8 : vector<8x200xf32>
    %10 = math.log1p %5 : vector<8x200xf32>
    %11 = arith.addf %9, %10 : vector<8x200xf32>
    %cst_4 = arith.constant 2.000000e+00 : f32
    %12 = vector.broadcast %cst_4 : f32 to vector<8x200xf32>
    %13 = arith.mulf %12, %1 : vector<8x200xf32>
    %cst_5 = arith.constant 1.000000e+00 : f32
    %14 = vector.broadcast %cst_5 : f32 to vector<8x200xf32>
    %15 = arith.subf %14, %13 : vector<8x200xf32>
    %16 = arith.mulf %0, %15 : vector<8x200xf32>
    %cst_6 = arith.constant 0.000000e+00 : f32
    %17 = vector.broadcast %cst_6 : f32 to vector<8x200xf32>
    %18 = arith.cmpf oge, %16, %17 : vector<8x200xf32>
    %cst_7 = arith.constant 1.000000e+00 : f32
    %19 = vector.broadcast %cst_7 : f32 to vector<8x200xf32>
    %20 = arith.select %18, %19, %5 : vector<8x200xi1>, vector<8x200xf32>
    %cst_8 = arith.constant 1.000000e+00 : f32
    %21 = vector.broadcast %cst_8 : f32 to vector<8x200xf32>
    %22 = arith.addf %21, %5 : vector<8x200xf32>
    %23 = tpu.reciprocal %22 : vector<8x200xf32> -> vector<8x200xf32>
    %24 = arith.mulf %20, %23 : vector<8x200xf32>
    %25 = arith.mulf %24, %24 : vector<8x200xf32>
    %26 = arith.mulf %25, %11 : vector<8x200xf32>
    %c1_i32 = arith.constant 1 : i32
    %27 = arith.cmpi eq, %arg0, %c1_i32 : i32
    %28 = arith.extui %27 : i1 to i32
    %c0_i32 = arith.constant 0 : i32
    %29 = arith.cmpi ne, %28, %c0_i32 : i32
    scf.if %29 {
      %33 = tpu.iota {dimensions = array<i32: 0>} : vector<8x1xi32>
      %c8_i32 = arith.constant 8 : i32
      %34 = arith.muli %arg0, %c8_i32 : i32
      %35 = vector.broadcast %34 : i32 to vector<8x1xi32>
      %36 = arith.addi %33, %35 : vector<8x1xi32>
      %c10_i32 = arith.constant 10 : i32
      %37 = vector.broadcast %c10_i32 : i32 to vector<8x1xi32>
      %38 = arith.cmpi slt, %36, %37 : vector<8x1xi32>
      %cst_10 = arith.constant 0.000000e+00 : f32
      %39 = vector.shape_cast %38 : vector<8x1xi1> to vector<8x1xi1>
      %40 = vector.broadcast %39 : vector<8x1xi1> to vector<8x200xi1>
      %41 = vector.broadcast %cst_10 : f32 to vector<8x200xf32>
      %42 = arith.select %40, %26, %41 : vector<8x200xi1>, vector<8x200xf32>
      %43 = vector.shape_cast %42 : vector<8x200xf32> to vector<1x8x200xf32>
      %cst_11 = arith.constant dense<0.000000e+00> : vector<8x200xf32>
      %44 = vector.multi_reduction <add>, %43, %cst_11 [0] : vector<1x8x200xf32> to vector<8x200xf32>
      %c0_12 = arith.constant 0 : index
      %c0_13 = arith.constant 0 : index
      %45 = vector.load %arg4[%c0_12, %c0_13] : memref<8x200xf32, #tpu.memory_space<vmem>>, vector<8x200xf32>
      tpu.vector_store %arg4[%c0_12, %c0_13], %44 {strides = array<i32>} : memref<8x200xf32, #tpu.memory_space<vmem>>, vector<8x200xf32>,
    } else {
    }
    %true = arith.constant true
    %30 = arith.xori %27, %true : i1
    %31 = arith.extui %30 : i1 to i32
    %c0_i32_9 = arith.constant 0 : i32
    %32 = arith.cmpi ne, %31, %c0_i32_9 : i32
    scf.if %32 {
      %33 = vector.shape_cast %26 : vector<8x200xf32> to vector<1x8x200xf32>
      %cst_10 = arith.constant dense<0.000000e+00> : vector<8x200xf32>
      %34 = vector.multi_reduction <add>, %33, %cst_10 [0] : vector<1x8x200xf32> to vector<8x200xf32>
      %c0_11 = arith.constant 0 : index
      %c0_12 = arith.constant 0 : index
      %35 = vector.load %arg4[%c0_11, %c0_12] : memref<8x200xf32, #tpu.memory_space<vmem>>, vector<8x200xf32>
      tpu.vector_store %arg4[%c0_11, %c0_12], %34 {strides = array<i32>} : memref<8x200xf32, #tpu.memory_space<vmem>>, vector<8x200xf32>,
    } else {
    }
    return
  }
  func.func @transform_0(%arg0: i32, %arg1: i32) -> (i32, i32) {
    %c0_i32 = arith.constant 0 : i32
    return %arg0, %arg1 : i32, i32
  }
  func.func @transform_1(%arg0: i32, %arg1: i32) -> (i32, i32) {
    %c0_i32 = arith.constant 0 : i32
    return %arg0, %arg1 : i32, i32
  }
  func.func @transform_2(%arg0: i32, %arg1: i32) -> (i32, i32) {
    %c0_i32 = arith.constant 0 : i32
    return %arg0, %arg1 : i32, i32
  }
}

</mosaic_0001>

<llo_original>
// kernel: tpu_custom_call.1
$region0: #{tpu_custom_call.1}
  #allocation0 [shape = 'u32[]', space=smem, size = 0x4, offset = 0x4, fixed_abs, tag = 'smem constant byte address 0x4 - core index']
  #allocation1 [shape = 'u32[144,128]{1,0:T(1,128)}', space=vmem, size = 0x12000, scoped, tag = 'internal scratch']
  %s0 = inlined_call_operand.hbm [shape: f32[10,200], index: 0, kind: input, shape index: {}]
  %s1 = inlined_call_operand.hbm [shape: f32[10,200], index: 1, kind: input, shape index: {}]
  %s2 = inlined_call_operand.hbm [shape: f32[16,200], index: 2, kind: output, shape index: {}]
  %s3 = sld [smem:[#allocation0]]
  $region57: #{tpu_custom_call.1} parent=0
    _
  %s5 = ssub.s32 1, %s3
  %s6 = scalar_select 0, %s5, %s3
  $region1: #{tpu_custom_call.1} parent=0
    #allocation2 [shape = 'u8[16384]{0}', space=vmem, size = 0x4000, scoped, tag = 'input window, operand 0']
    #allocation3 [shape = 's32[2]{0}', space=sflag, size = 0x8, scoped, tag = 'scoped memory for tpu_custom_call.1']
    #allocation4 [shape = 's32[2]{0}', space=sflag, size = 0x8, scoped, tag = 'scoped memory for tpu_custom_call.1']
    #allocation5 [shape = 'u8[16384]{0}', space=vmem, size = 0x4000, scoped, tag = 'input window, operand 1']
    #allocation6 [shape = 's32[2]{0}', space=sflag, size = 0x8, scoped, tag = 'scoped memory for tpu_custom_call.1']
    #allocation7 [shape = 'u8[16384]{0}', space=vmem, size = 0x4000, scoped, tag = 'output window, operand 0']
    %7 = vsyncpa [#allocation3], 0
    %s8 = scalar_lea.sflag [#allocation3], 1
    %9 = vsyncpa %s8, 0
    %10 = vsyncpa [#allocation6], 0
    %s11 = scalar_lea.sflag [#allocation6], 1
    %12 = vsyncpa %s11, 0
    %13 = vsyncpa [#allocation4], 0
    %s14 = scalar_lea.sflag [#allocation4], 1
    %15 = vsyncpa %s14, 0
    loop: start=0, step=1, limit=4
    $region2: #{tpu_custom_call.1} parent=1 // loop_pre_header
      _
    $region3: #{tpu_custom_call.1} parent=1 // loop_header
      %s17 = sphi 0, %s21
      %p18 = scmp.ge.s32.totalorder %s17, 4
      %s24 = sphi 0, %s36
      %s25 = sphi 0, %s32
      %s26 = sphi 0, %s24
      %s27 = sphi 0, %s25
      %s28 = sphi 0, %s26
      %s29 = sphi 0, %s27
      %s41 = sphi 0, %s43
      %s44 = sphi 0, %s41
      %s45 = sphi 0, %s44
      %s61 = sphi 0, %s45
      %s69 = sphi 0, %s71
      %s72 = sphi 0, %s69
      %s73 = sphi 0, %s72
      %s89 = sphi 0, %s73
      %s97 = sphi 0, %s99
      %s100 = sphi 0, %s97
      %s101 = sphi 0, %s100
      %s117 = sphi 0, %s101
    $region4: #{tpu_custom_call.1} parent=1 // loop_header_branch
      %20 = sbr.rel (%p18) target = $region8
    $region5: #{tpu_custom_call.1} parent=1 // loop_body
      %s22 = ssub.s32 %s17, 1
      %s23 = ssub.s32 %s17, 2
      %s30 = sadd.s32 1, %s25
      %p31 = scmp.ge.s32.totalorder %s30, 1
      %s32 = scalar_select %p31, 0, %s30
      %s33 = sadd.s32 1, %s24
      %s34 = scalar_select %p31, %s33, %s24
      %p35 = scmp.ge.s32.totalorder %s34, 2
      %s36 = scalar_select %p35, 0, %s34
      %s37 = ssub.s32 %s24, %s36
      %s38 = ssub.s32 %s25, %s32
      %s39 = sor.u32 %s37, %s38
      %p40 = scmp.eq.s32.totalorder %s39, 0
      %s42 = sadd.s32 %s41, 1
      %s43 = scalar_select %p40, %s41, %s42
      %p46 = pneg %p40
      %p47 = scmp.eq.s32.totalorder %s17, 1
      %p48 = por %p46, %p47
      %p49 = scmp.ne.s32.totalorder %s41, %s44
      %p50 = scmp.eq.s32.totalorder %s17, 0
      %p51 = por %p49, %p50
      %p52 = scmp.ne.s32.totalorder %s41, %s44
      %p53 = scmp.eq.s32.totalorder %s22, 1
      %p54 = por %p52, %p53
      %p55 = scmp.ne.s32.totalorder %s44, %s45
      %p56 = scmp.eq.s32.totalorder %s22, 0
      %p57 = por %p55, %p56
      %p58 = scmp.ne.s32.totalorder %s44, %s45
      %p59 = scmp.eq.s32.totalorder %s23, 1
      %p60 = por %p58, %p59
      %p62 = scmp.ne.s32.totalorder %s45, %s61
      %p63 = scmp.eq.s32.totalorder %s23, 0
      %p64 = por %p62, %p63
      %s65 = ssub.s32 %s24, %s36
      %s66 = ssub.s32 %s25, %s32
      %s67 = sor.u32 %s65, %s66
      %p68 = scmp.eq.s32.totalorder %s67, 0
      %s70 = sadd.s32 %s69, 1
      %s71 = scalar_select %p68, %s69, %s70
      %p74 = pneg %p68
      %p75 = scmp.eq.s32.totalorder %s17, 1
      %p76 = por %p74, %p75
      %p77 = scmp.ne.s32.totalorder %s69, %s72
      %p78 = scmp.eq.s32.totalorder %s17, 0
      %p79 = por %p77, %p78
      %p80 = scmp.ne.s32.totalorder %s69, %s72
      %p81 = scmp.eq.s32.totalorder %s22, 1
      %p82 = por %p80, %p81
      %p83 = scmp.ne.s32.totalorder %s72, %s73
      %p84 = scmp.eq.s32.totalorder %s22, 0
      %p85 = por %p83, %p84
      %p86 = scmp.ne.s32.totalorder %s72, %s73
      %p87 = scmp.eq.s32.totalorder %s23, 1
      %p88 = por %p86, %p87
      %p90 = scmp.ne.s32.totalorder %s73, %s89
      %p91 = scmp.eq.s32.totalorder %s23, 0
      %p92 = por %p90, %p91
      %s93 = ssub.s32 %s24, %s36
      %s94 = ssub.s32 %s25, %s32
      %s95 = sor.u32 %s93, %s94
      %p96 = scmp.eq.s32.totalorder %s95, 0
      %s98 = sadd.s32 %s97, 1
      %s99 = scalar_select %p96, %s97, %s98
      %p102 = pneg %p96
      %p103 = scmp.eq.s32.totalorder %s17, 1
      %p104 = por %p102, %p103
      %p105 = scmp.ne.s32.totalorder %s97, %s100
      %p106 = scmp.eq.s32.totalorder %s17, 0
      %p107 = por %p105, %p106
      %p108 = scmp.ne.s32.totalorder %s97, %s100
      %p109 = scmp.eq.s32.totalorder %s22, 1
      %p110 = por %p108, %p109
      %p111 = scmp.ne.s32.totalorder %s100, %s101
      %p112 = scmp.eq.s32.totalorder %s22, 0
      %p113 = por %p111, %p112
      %p114 = scmp.ne.s32.totalorder %s100, %s101
      %p115 = scmp.eq.s32.totalorder %s23, 1
      %p116 = por %p114, %p115
      %p118 = scmp.ne.s32.totalorder %s101, %s117
      %p119 = scmp.eq.s32.totalorder %s23, 0
      %p120 = por %p118, %p119
      %p121 = scmp.le.s32.totalorder 1, %s17
      %p122 = scmp.lt.s32.totalorder %s17, 3
      %p123 = pnand %p121, %p122
      %p124 = pneg %p123
      // Predicated region
      $region9: #{tpu_custom_call.1} parent=5 // pred_check
        _
      $region10: #{tpu_custom_call.1} parent=5 // pred_check_branch
        %126 = sbr.rel (%p123) target = $region12
      $region11: #{tpu_custom_call.1} parent=5 // pred_region
        %s127 = ssub.s32 %s17, 1
      $region12: #{tpu_custom_call.1} parent=5 // pred_fallthru
        _
      %p128 = scmp.lt.s32.totalorder %s17, 2
      // Predicated region
      $region13: #{tpu_custom_call.1} parent=5 // pred_check
        %p129 = pneg %p128
      $region14: #{tpu_custom_call.1} parent=5 // pred_check_branch
        %131 = sbr.rel (%p129) target = $region16
      $region15: #{tpu_custom_call.1} parent=5 // pred_region
        // Predicated region
        $region17: #{tpu_custom_call.1} parent=15 // pred_check
          %p132 = pneg %p51
        $region18: #{tpu_custom_call.1} parent=15 // pred_check_branch
          %134 = sbr.rel (%p132) target = $region20
        $region19: #{tpu_custom_call.1} parent=15 // pred_region
          %s135 = sand.u32 %s41, 1
          %s136 = scalar_lea.sflag [#allocation3], %s135
          %s137 = sand.u32 %s41, 1
          %s138 = smul.addr %s137, 16
          %s139 = scalar_lea.vmem [#allocation2], %s138
          %s140 = smul.u32 2, %s25
          %s142 = ssub.s32 256, 256
          %143 = vsyncadd %s136, %s142
          %s144 = smul.addr %s24, 2
          %s145 = sadd.s32 %s140, %s144
          %s146 = smul.addr %s145, 128
          %s147 = scalar_lea.hbm %s0, %s146
          %s149 = sshll.u32 %s139, 4
          %s150 = int_to_ptr.vmem [resolvable:$true] %s149
          %152 = dma.hbm_to_vmem [thread:$0]  %s147, 256, %s150, %s136
        $region20: #{tpu_custom_call.1} parent=15 // pred_fallthru
          _
        // Predicated region
        $region21: #{tpu_custom_call.1} parent=15 // pred_check
          %p153 = pneg %p79
        $region22: #{tpu_custom_call.1} parent=15 // pred_check_branch
          %155 = sbr.rel (%p153) target = $region24
        $region23: #{tpu_custom_call.1} parent=15 // pred_region
          %s156 = sand.u32 %s69, 1
          %s157 = scalar_lea.sflag [#allocation6], %s156
          %s158 = sand.u32 %s69, 1
          %s159 = smul.addr %s158, 16
          %s160 = scalar_lea.vmem [#allocation5], %s159
          %s161 = smul.u32 2, %s25
          %s163 = ssub.s32 256, 256
          %164 = vsyncadd %s157, %s163
          %s165 = smul.addr %s24, 2
          %s166 = sadd.s32 %s161, %s165
          %s167 = smul.addr %s166, 128
          %s168 = scalar_lea.hbm %s1, %s167
          %s170 = sshll.u32 %s160, 4
          %s171 = int_to_ptr.vmem [resolvable:$true] %s170
          %173 = dma.hbm_to_vmem [thread:$0]  %s168, 256, %s171, %s157
        $region24: #{tpu_custom_call.1} parent=15 // pred_fallthru
          _
      $region16: #{tpu_custom_call.1} parent=5 // pred_fallthru
        _
      %p174 = scmp.le.s32.totalorder 1, %s17
      %p175 = scmp.lt.s32.totalorder %s17, 3
      %p176 = pnand %p174, %p175
      %p177 = pneg %p176
      // Predicated region
      $region25: #{tpu_custom_call.1} parent=5 // pred_check
        _
      $region26: #{tpu_custom_call.1} parent=5 // pred_check_branch
        %179 = sbr.rel (%p176) target = $region28
      $region27: #{tpu_custom_call.1} parent=5 // pred_region
        %s180 = ssub.s32 %s17, 1
        %s181 = sand.u32 %s44, 1
        %s182 = scalar_lea.sflag [#allocation3], %s181
        %s183 = sand.u32 %s44, 1
        %s184 = smul.addr %s183, 16
        %s185 = scalar_lea.vmem [#allocation2], %s184
        // Predicated region
        $region29: #{tpu_custom_call.1} parent=27 // pred_check
          %p186 = pneg %p57
        $region30: #{tpu_custom_call.1} parent=27 // pred_check_branch
          %188 = sbr.rel (%p186) target = $region32
        $region31: #{tpu_custom_call.1} parent=27 // pred_region
          %189 = dma.done %s182, 256
        $region32: #{tpu_custom_call.1} parent=27 // pred_fallthru
          _
        %s190 = sand.u32 %s72, 1
        %s191 = scalar_lea.sflag [#allocation6], %s190
        %s192 = sand.u32 %s72, 1
        %s193 = smul.addr %s192, 16
        %s194 = scalar_lea.vmem [#allocation5], %s193
        // Predicated region
        $region33: #{tpu_custom_call.1} parent=27 // pred_check
          %p195 = pneg %p85
        $region34: #{tpu_custom_call.1} parent=27 // pred_check_branch
          %197 = sbr.rel (%p195) target = $region36
        $region35: #{tpu_custom_call.1} parent=27 // pred_region
          %198 = dma.done %s191, 256
        $region36: #{tpu_custom_call.1} parent=27 // pred_fallthru
          _
        %s199 = sand.u32 %s44, 1
        %s200 = scalar_lea.sflag [#allocation3], %s199
        %s201 = sand.u32 %s44, 1
        %s202 = smul.addr %s201, 16
        %s203 = scalar_lea.vmem [#allocation2], %s202
        %p204 = pneg %p57
        %p205 = pneg %p54
        %s206 = sand.u32 %s72, 1
        %s207 = scalar_lea.sflag [#allocation6], %s206
        %s208 = sand.u32 %s72, 1
        %s209 = smul.addr %s208, 16
        %s210 = scalar_lea.vmem [#allocation5], %s209
        %p211 = pneg %p85
        %p212 = pneg %p82
        %p213 = pneg %p113
        %p214 = pneg %p110
        %s215 = sand.u32 %s100, 1
        %s216 = scalar_lea.sflag [#allocation4], %s215
        %s217 = sand.u32 %s100, 1
        %s218 = smul.addr %s217, 16
        %s219 = scalar_lea.vmem [#allocation7], %s218
        %s220 = smul.u32 2, %s27
        %s221 = smul.u32 2, %s27
        %s222 = smul.u32 2, %s27
        %v223 = vld [vmem:[%s185] sm:$0xff]
        %v224 = vld [vmem:[%s185 + $0x8] sm:$0xff]
        %v225 = vld [vmem:[%s194] sm:$0xff]
        %v226 = vld [vmem:[%s194 + $0x8] sm:$0xff]
        %v227 = vand.u32 2147483647, %v223
        %v228 = vand.u32 2147483647, %v224
        %v229 = vsub.f32 0.0, %v227
        %v230 = vsub.f32 0.0, %v228
        %v231 = vmul.f32 %v229, 1.442695
        %v232 = vpow.pop %v231
        %v233 = vmul.f32 %v230, 1.442695
        %v234 = vpow.pop %v233
        %v235 = vmax.f32 %v223, 0.0
        %v236 = vmax.f32 %v224, 0.0
        %v237 = vmul.f32 %v223, %v225
        %v238 = vmul.f32 %v224, %v226
        %v239 = vsub.f32 %v235, %v237
        %v240 = vsub.f32 %v236, %v238
        %v241 = vadd.f32 %v232, 1.0
        %v242 = vlog2.pop %v241
        %v243 = vmul.f32 %v242, 0.6931472
        %v244 = vmul.f32 -0.5, %v232
        %v245 = vadd.f32 %v244, 1.0
        %v246 = vmul.f32 %v245, %v232
        %v247 = vand.u32 2147483647, %v232
        %vm248 = vcmp.lt.f32.partialorder %v247, 0.0004427343
        %v249 = vsel %vm248, %v246, %v243
        %v250 = vadd.f32 %v234, 1.0
        %v251 = vlog2.pop %v250
        %v252 = vmul.f32 %v251, 0.6931472
        %v253 = vmul.f32 -0.5, %v234
        %v254 = vadd.f32 %v253, 1.0
        %v255 = vmul.f32 %v254, %v234
        %v256 = vand.u32 2147483647, %v234
        %vm257 = vcmp.lt.f32.partialorder %v256, 0.0004427343
        %v258 = vsel %vm257, %v255, %v252
        %v259 = vadd.f32 %v239, %v249
        %v260 = vadd.f32 %v240, %v258
        %v261 = vmul.f32 %v225, 2.0
        %v262 = vmul.f32 %v226, 2.0
        %v263 = vsub.f32 1.0, %v261
        %v264 = vsub.f32 1.0, %v262
        %v265 = vmul.f32 %v223, %v263
        %v266 = vmul.f32 %v224, %v264
        %vm267 = vcmp.ge.f32.partialorder %v265, 0.0
        %vm268 = vcmp.ge.f32.partialorder %v266, 0.0
        %v269 = vsel %vm267, 1.0, %v232
        %v270 = vsel %vm268, 1.0, %v234
        %v271 = vadd.f32 %v232, 1.0
        %v272 = vadd.f32 %v234, 1.0
        %v273 = vrcp.pop %v271
        %v274 = vrcp.pop %v272
        %v275 = vmul.f32 %v269, %v273
        %v276 = vmul.f32 %v270, %v274
        %v277 = vmul.f32 %v275, %v275
        %v278 = vmul.f32 %v276, %v276
        %v279 = vmul.f32 %v277, %v259
        %v280 = vmul.f32 %v278, %v260
        %p281 = scmp.eq.s32.totalorder %s26, 1
        // Predicated region
        $region37: #{tpu_custom_call.1} parent=27 // pred_check
          %p282 = pneg %p281
        $region38: #{tpu_custom_call.1} parent=27 // pred_check_branch
          %284 = sbr.rel (%p282) target = $region40
        $region39: #{tpu_custom_call.1} parent=27 // pred_region
          %v285 = vlaneseq
          %v286 = vshrl.u32 %v285, 7
          %s287 = smul.u32 %s26, 8
          %v288 = vstv %s287
          %v289 = vadd.s32 %v286, %v288
          %vm290 = vcmp.lt.s32.totalorder %v289, 10
          %v291 = vsel %vm290, 1, 0
          %vm292 = vcmp.eq.s32.totalorder %v291, 1
          %v293 = vsel %vm292, %v279, 0.0
          %v294 = vsel %vm292, %v280, 0.0
          %v295 = vadd.f32 %v293, 0.0
          %v296 = vadd.f32 %v294, 0.0
          %297 = vst [vmem:[%s219] sm:$0xff] %v295
          %vm298 = vcmask 588800
          %299 = vst.msk [vmem:[%s219 + $0x8] sm:$0xff] %vm298, %v296
        $region40: #{tpu_custom_call.1} parent=27 // pred_fallthru
          _
        %p300 = scmp.ne.s32.totalorder %s26, 1
        // Predicated region
        $region41: #{tpu_custom_call.1} parent=27 // pred_check
          %p301 = pneg %p300
        $region42: #{tpu_custom_call.1} parent=27 // pred_check_branch
          %303 = sbr.rel (%p301) target = $region44
        $region43: #{tpu_custom_call.1} parent=27 // pred_region
          %v304 = vadd.f32 %v279, 0.0
          %v305 = vadd.f32 %v280, 0.0
          %306 = vst [vmem:[%s219] sm:$0xff] %v304
          %vm307 = vcmask 588800
          %308 = vst.msk [vmem:[%s219 + $0x8] sm:$0xff] %vm307, %v305
        $region44: #{tpu_custom_call.1} parent=27 // pred_fallthru
          _
        %s309 = sand.u32 %s100, 1
        %s310 = scalar_lea.sflag [#allocation4], %s309
        %s311 = sand.u32 %s100, 1
        %s312 = smul.addr %s311, 16
        %s313 = scalar_lea.vmem [#allocation7], %s312
        // Predicated region
        $region45: #{tpu_custom_call.1} parent=27 // pred_check
          %p314 = pneg %p110
        $region46: #{tpu_custom_call.1} parent=27 // pred_check_branch
          %316 = sbr.rel (%p314) target = $region48
        $region47: #{tpu_custom_call.1} parent=27 // pred_region
          %s317 = smul.u32 2, %s27
          %s319 = ssub.s32 256, 256
          %320 = vsyncadd %s310, %s319
          %s321 = smul.addr %s26, 2
          %s322 = sadd.s32 %s317, %s321
          %s323 = smul.addr %s322, 128
          %s324 = scalar_lea.hbm %s2, %s323
          %s326 = sshll.u32 %s313, 4
          %s327 = int_to_ptr.vmem [resolvable:$true] %s326
          %329 = dma.vmem_to_hbm [thread:$0]  %s327, 256, %s324, %s310
        $region48: #{tpu_custom_call.1} parent=27 // pred_fallthru
          _
      $region28: #{tpu_custom_call.1} parent=5 // pred_fallthru
        _
      %p330 = scmp.le.s32.totalorder 2, %s17
      // Predicated region
      $region49: #{tpu_custom_call.1} parent=5 // pred_check
        %p331 = pneg %p330
      $region50: #{tpu_custom_call.1} parent=5 // pred_check_branch
        %333 = sbr.rel (%p331) target = $region52
      $region51: #{tpu_custom_call.1} parent=5 // pred_region
        %s334 = ssub.s32 %s17, 2
        // Predicated region
        $region53: #{tpu_custom_call.1} parent=51 // pred_check
          %p335 = pneg %p116
        $region54: #{tpu_custom_call.1} parent=51 // pred_check_branch
          %337 = sbr.rel (%p335) target = $region56
        $region55: #{tpu_custom_call.1} parent=51 // pred_region
          %s338 = sand.u32 %s101, 1
          %s339 = scalar_lea.sflag [#allocation4], %s338
          %s340 = sand.u32 %s101, 1
          %s341 = smul.addr %s340, 16
          %s342 = scalar_lea.vmem [#allocation7], %s341
          %343 = dma.done %s339, 256
        $region56: #{tpu_custom_call.1} parent=51 // pred_fallthru
          _
      $region52: #{tpu_custom_call.1} parent=5 // pred_fallthru
        _
    $region6: #{tpu_custom_call.1} parent=1 // loop_footer
      %s21 = sadd.s32 1, %s17
    $region7: #{tpu_custom_call.1} parent=1 // loop_footer_branch
      %16 = sbr.rel target = $region3
    $region8: #{tpu_custom_call.1} parent=1 // loop_exit
      _
    %344 = vsyncpa [#allocation3], 1
    %s345 = scalar_lea.sflag [#allocation3], 1
    %346 = vsyncpa %s345, 1
    %347 = vsyncpa [#allocation6], 1
    %s348 = scalar_lea.sflag [#allocation6], 1
    %349 = vsyncpa %s348, 1
    %350 = vsyncpa [#allocation4], 1
    %s351 = scalar_lea.sflag [#allocation4], 1
    %352 = vsyncpa %s351, 1

</llo_original>
